<compile_context>
chip_gen: v7x
topology: tpu7x:2x2x1
jax: 0.10.0
libtpu: 0.0.40
codegen_flags: <defaults>
</compile_context>

<pallas_src>
import math
import numpy as np

import jax
import jax.numpy as jnp
from jax import lax
from jax.experimental import pallas as pl
from jax.experimental.pallas import tpu as pltpu

_M = 4
_PI_LIT = 3.14159265  # the literal used by the PyTorch module (not math.pi)

# k = floor(m * acos(c) / PI_LIT). acos is monotone decreasing, so
#   k >= j  <=>  acos(c) >= j * PI_LIT / m  <=>  c <= cos(j * PI_LIT / m)
# We compute k as a sum of threshold comparisons (no acos lowering needed,
# identical real-valued semantics).
_K_THRESHOLDS = tuple(float(np.cos(j * _PI_LIT / _M)) for j in range(1, _M + 1))


def _round_up(a, b):
    return -(-a // b) * b


def sphereface_kernel(inv_lamb_ref, label_ref, xnorm_ref, xn_ref, wt_ref, o_ref):
    j = pl.program_id(0)
    tc = o_ref.shape[1]

    xn = xn_ref[...]                              # (B, D) f32, pre-normalized rows
    wt = wt_ref[...].astype(jnp.float32)          # (D, TC) weight tile (streamed)

    # Per-class L2 normalization of this weight tile (reduce over D, rsqrt on EUP).
    w_sumsq = jnp.sum(wt * wt, axis=0, keepdims=True)          # (1, TC)
    wn = wt * lax.rsqrt(jnp.maximum(w_sumsq, 1e-24))           # F.normalize(weight)

    # cos_theta tile = xn @ wn  -> MXU, lane-dense over classes.
    cos_theta = jnp.dot(xn, wn, preferred_element_type=jnp.float32)
    cos_theta = jnp.clip(cos_theta, -1.0, 1.0)                 # (B, TC)

    # one-hot for this class tile (rows whose label is outside the tile -> all zero).
    col = j * tc + lax.broadcasted_iota(jnp.int32, cos_theta.shape, 1)
    one_hot = (col == label_ref[...]).astype(jnp.float32)      # (B, TC)

    # Only the label column feeds the margin math -> collapse to (B, 1).
    target_cos = jnp.sum(one_hot * cos_theta, axis=1, keepdims=True)  # (B, 1)

    # mlambda[4]: cos(4*theta) = 8 c^4 - 8 c^2 + 1  (on the (B,1) target only).
    c2 = target_cos * target_cos
    cos_m_theta = 8.0 * c2 * c2 - 8.0 * c2 + 1.0

    # k = floor(m * theta / PI_LIT) via monotone thresholds, all in f32.
    k = jnp.zeros_like(target_cos)
    for t in _K_THRESHOLDS:
        k = k + jnp.where(target_cos <= jnp.float32(t), 1.0, 0.0)

    # (-1)^k for integer-valued k in f32: 1 - 2 * (k mod 2).
    sign = 1.0 - 2.0 * (k - 2.0 * jnp.floor(k * 0.5))
    phi_theta = sign * cos_m_theta - 2.0 * k                   # (B, 1)

    inv_lamb = inv_lamb_ref[0, 0]                              # 1 / (1 + lamb)
    corr = (phi_theta - target_cos) * inv_lamb                 # (B, 1)

    # output = (cos_theta + one_hot * (phi - cos_label) / (1+lamb)) * ||x||
    out = (cos_theta + one_hot * corr) * xnorm_ref[...]
    o_ref[...] = out.astype(o_ref.dtype)


def sphereface_forward(x, weight, label, lamb, *, class_tile=512):
    """x: (B, D) f32, weight: (C, D) f32, label: (B,) int, lamb: python float."""
    B, D = x.shape
    C, _ = weight.shape

    # Class tile: multiple of 128 lanes, at most class_tile, at most padded C.
    tc = min(_round_up(class_tile, 128), _round_up(C, 128))

    # ---- one-time prep, hoisted out of the per-class-tile loop ----
    x = x.astype(jnp.float32)
    sumsq = jnp.sum(x * x, axis=1, keepdims=True)
    x_norm = jnp.sqrt(sumsq)                               # NormOfFeature (B, 1)
    xn = x / jnp.maximum(x_norm, 1e-12)                    # F.normalize(input)

    wt = weight.astype(jnp.float32).T                      # (D, C): natural MXU rhs
    # TODO(synk): for large C on v6e/v7x, stream wt as bf16 to halve HBM bytes
    # (validate cos_theta precision near +/-1 first).

    # Pad B to a multiple of 8 (f32 sublane) and C to a multiple of the class tile.
    B_pad = _round_up(B, 8)
    C_pad = _round_up(C, tc)
    label = label.astype(jnp.int32)
    if B_pad != B:
        pad = B_pad - B
        xn = jnp.pad(xn, ((0, pad), (0, 0)))
        x_norm = jnp.pad(x_norm, ((0, pad), (0, 0)))
        label = jnp.pad(label, ((0, pad),))
    if C_pad != C:
        wt = jnp.pad(wt, ((0, 0), (0, C_pad - C)))

    label2d = label.reshape(B_pad, 1)
    inv_lamb = jnp.full((1, 1), 1.0 / (1.0 + lamb), dtype=jnp.float32)

    grid = (C_pad // tc,)

    # VMEM budget: 2x weight tile + 2x out tile (double buffered) + resident
    # xn / x_norm / label (lane-padded to 128), with 2x headroom, capped well
    # under v7x's 64 MiB physical VMEM.
    vmem_bytes = (2 * D * tc * 4 + 2 * B_pad * tc * 4
                  + 2 * B_pad * D * 4 + 4 * B_pad * 128 * 4)
    vmem_limit = int(min(max(4 << 20, 2 * vmem_bytes), 48 << 20))

    out = pl.pallas_call(
        sphereface_kernel,
        out_shape=jax.ShapeDtypeStruct((B_pad, C_pad), jnp.float32),
        grid=grid,
        in_specs=[
            pl.BlockSpec(memory_space=pltpu.MemorySpace.SMEM),   # 1/(1+lamb) scalar
            pl.BlockSpec((B_pad, 1), lambda j: (0, 0)),          # label   (resident)
            pl.BlockSpec((B_pad, 1), lambda j: (0, 0)),          # x_norm  (resident)
            pl.BlockSpec((B_pad, D), lambda j: (0, 0)),          # xn      (resident)
            pl.BlockSpec((D, tc), lambda j: (0, j)),             # weight tile (streamed)
        ],
        out_specs=pl.BlockSpec((B_pad, tc), lambda j: (0, j)),
        compiler_params=pltpu.CompilerParams(
            dimension_semantics=("parallel",),
            vmem_limit_bytes=vmem_limit),
    )(inv_lamb, label2d, x_norm, xn, wt)

    return out[:B, :C]


def _sphereface_reference(x, weight, label, lamb):
    """Pure-JAX reference matching the PyTorch forward."""
    x = x.astype(jnp.float32)
    w = weight.astype(jnp.float32)
    xn = x / jnp.maximum(jnp.linalg.norm(x, axis=1, keepdims=True), 1e-12)
    wn = w / jnp.maximum(jnp.linalg.norm(w, axis=1, keepdims=True), 1e-12)
    cos_theta = jnp.clip(xn @ wn.T, -1.0, 1.0)
    cos_m_theta = 8.0 * cos_theta**4 - 8.0 * cos_theta**2 + 1.0
    theta = jnp.arccos(cos_theta)
    k = jnp.floor(_M * theta / _PI_LIT)
    phi_theta = (-1.0) ** k * cos_m_theta - 2.0 * k
    norm_of_feature = jnp.linalg.norm(x, axis=1, keepdims=True)
    one_hot = jax.nn.one_hot(label, weight.shape[0], dtype=jnp.float32)
    out = one_hot * (phi_theta - cos_theta) / (1.0 + lamb) + cos_theta
    return out * norm_of_feature


if __name__ == "__main__":
    B, D, C = 8, 64, 256   # batch, in_features, out_features

    key = jax.random.PRNGKey(0)
    kx, kw, kl = jax.random.split(key, 3)

    x = jax.random.normal(kx, (B, D), dtype=jnp.float32)

    # Deterministic xavier_uniform_ init for weight (out_features, in_features).
    bound = math.sqrt(6.0 / (D + C))
    weight = jax.random.uniform(kw, (C, D), minval=-bound, maxval=bound,
                                dtype=jnp.float32)

    label = jax.random.randint(kl, (B,), 0, C, dtype=jnp.int32)

    # forward() increments self.iter; first call => iter = 1
    it = 1
    lamb = max(5.0, 1000.0 * (1.0 + 0.12 * it) ** (-1.0))

    # class_tile=128 here so the grid has 2 class tiles (exercises the
    # streamed/pipelined path even at this small test size).
    out = sphereface_forward(x, weight, label, lamb, class_tile=128)
    jax.block_until_ready(out)
    assert out.shape == (B, C) and out.dtype == jnp.float32

    ref = _sphereface_reference(x, weight, label, lamb)
    np.testing.assert_allclose(np.asarray(out), np.asarray(ref),
                               rtol=2e-3, atol=2e-3)
    print("KERNEL_OK")
</pallas_src>

<mosaic_0001>
module attributes {stable_mosaic.version = 11 : i64} {
  func.func @sphereface_kernel(%arg0: i32, %arg1: memref<1x1xf32, #tpu.memory_space<smem>>, %arg2: memref<8x1xi32, #tpu.memory_space<vmem>>, %arg3: memref<8x1xf32, #tpu.memory_space<vmem>>, %arg4: memref<8x64xf32, #tpu.memory_space<vmem>>, %arg5: memref<64x128xf32, #tpu.memory_space<vmem>>, %arg6: memref<8x128xf32, #tpu.memory_space<vmem>>) attributes {dimension_semantics = [#tpu.dimension_semantics<parallel>], iteration_bounds = array<i64: 2>, scalar_prefetch = 0 : i64, scratch_operands = 0 : i64, tpu.core_type = #tpu.core_type<tc>, window_params = [{transform_indices = @transform_0, window_bounds = array<i64: 1, 1>}, {pipeline_mode = #tpu.pipeline_mode<synchronous>, transform_indices = @transform_1, window_bounds = array<i64: 8, 1>}, {pipeline_mode = #tpu.pipeline_mode<synchronous>, transform_indices = @transform_2, window_bounds = array<i64: 8, 1>}, {pipeline_mode = #tpu.pipeline_mode<synchronous>, transform_indices = @transform_3, window_bounds = array<i64: 8, 64>}, {transform_indices = @transform_4, window_bounds = array<i64: 64, 128>}, {transform_indices = @transform_5, window_bounds = array<i64: 8, 128>}]} {
    %c0 = arith.constant 0 : index
    %c0_0 = arith.constant 0 : index
    %0 = vector.load %arg4[%c0, %c0_0] : memref<8x64xf32, #tpu.memory_space<vmem>>, vector<8x64xf32>
    %c0_1 = arith.constant 0 : index
    %c0_2 = arith.constant 0 : index
    %1 = vector.load %arg5[%c0_1, %c0_2] : memref<64x128xf32, #tpu.memory_space<vmem>>, vector<64x128xf32>
    %2 = arith.mulf %1, %1 : vector<64x128xf32>
    %cst = arith.constant dense<0.000000e+00> : vector<128xf32>
    %3 = vector.multi_reduction <add>, %2, %cst [0] : vector<64x128xf32> to vector<128xf32>
    %4 = vector.shape_cast %3 : vector<128xf32> to vector<1x128xf32>
    %cst_3 = arith.constant 1.000000e-24 : f32
    %5 = vector.broadcast %cst_3 : f32 to vector<1x128xf32>
    %6 = arith.maximumf %4, %5 : vector<1x128xf32>
    %7 = math.rsqrt %6 : vector<1x128xf32>
    %8 = vector.broadcast %7 : vector<1x128xf32> to vector<64x128xf32>
    %9 = arith.mulf %1, %8 : vector<64x128xf32>
    %cst_4 = arith.constant dense<0.000000e+00> : vector<8x128xf32>
    %10 = tpu.matmul %0, %9, %cst_4 {dimension_numbers = #tpu.dot_dimension_numbers<[1], [0], [0], [1], [0, 0, 1, 1], [], []>} : vector<8x64xf32>, vector<64x128xf32>, vector<8x128xf32> -> vector<8x128xf32>
    %cst_5 = arith.constant -1.000000e+00 : f32
    %cst_6 = arith.constant 1.000000e+00 : f32
    %11 = vector.broadcast %cst_5 : f32 to vector<8x128xf32>
    %12 = arith.maximumf %11, %10 : vector<8x128xf32>
    %13 = vector.broadcast %cst_6 : f32 to vector<8x128xf32>
    %14 = arith.minimumf %13, %12 : vector<8x128xf32>
    %c128_i32 = arith.constant 128 : i32
    %15 = arith.muli %arg0, %c128_i32 : i32
    %16 = tpu.iota {dimensions = array<i32: 1>} : vector<8x128xi32>
    %17 = vector.broadcast %15 : i32 to vector<8x128xi32>
    %18 = arith.addi %17, %16 : vector<8x128xi32>
    %c0_7 = arith.constant 0 : index
    %c0_8 = arith.constant 0 : index
    %19 = vector.load %arg2[%c0_7, %c0_8] : memref<8x1xi32, #tpu.memory_space<vmem>>, vector<8x1xi32>
    %20 = vector.broadcast %19 : vector<8x1xi32> to vector<8x128xi32>
    %21 = arith.cmpi eq, %18, %20 : vector<8x128xi32>
    %22 = arith.extui %21 : vector<8x128xi1> to vector<8x128xi32>
    %23 = arith.sitofp %22 : vector<8x128xi32> to vector<8x128xf32>
    %24 = arith.mulf %23, %14 : vector<8x128xf32>
    %cst_9 = arith.constant dense<0.000000e+00> : vector<8xf32>
    %25 = vector.multi_reduction <add>, %24, %cst_9 [1] : vector<8x128xf32> to vector<8xf32>
    %26 = vector.shape_cast %25 : vector<8xf32> to vector<8x1xf32>
    %27 = arith.mulf %26, %26 : vector<8x1xf32>
    %cst_10 = arith.constant 8.000000e+00 : f32
    %28 = vector.broadcast %cst_10 : f32 to vector<8x1xf32>
    %29 = arith.mulf %28, %27 : vector<8x1xf32>
    %30 = arith.mulf %29, %27 : vector<8x1xf32>
    %cst_11 = arith.constant 8.000000e+00 : f32
    %31 = vector.broadcast %cst_11 : f32 to vector<8x1xf32>
    %32 = arith.mulf %31, %27 : vector<8x1xf32>
    %33 = arith.subf %30, %32 : vector<8x1xf32>
    %cst_12 = arith.constant 1.000000e+00 : f32
    %34 = vector.broadcast %cst_12 : f32 to vector<8x1xf32>
    %35 = arith.addf %33, %34 : vector<8x1xf32>
    %cst_13 = arith.constant 0.000000e+00 : f32
    %36 = vector.broadcast %cst_13 : f32 to vector<8x1xf32>
    %cst_14 = arith.constant 0.707106769 : f32
    %37 = vector.broadcast %cst_14 : f32 to vector<8x1xf32>
    %38 = arith.cmpf ole, %26, %37 : vector<8x1xf32>
    %cst_15 = arith.constant 1.000000e+00 : f32
    %cst_16 = arith.constant 0.000000e+00 : f32
    %39 = vector.broadcast %cst_15 : f32 to vector<8x1xf32>
    %40 = vector.broadcast %cst_16 : f32 to vector<8x1xf32>
    %41 = arith.select %38, %39, %40 : vector<8x1xi1>, vector<8x1xf32>
    %42 = arith.addf %36, %41 : vector<8x1xf32>
    %cst_17 = arith.constant 1.79489656E-9 : f32
    %43 = vector.broadcast %cst_17 : f32 to vector<8x1xf32>
    %44 = arith.cmpf ole, %26, %43 : vector<8x1xf32>
    %cst_18 = arith.constant 1.000000e+00 : f32
    %cst_19 = arith.constant 0.000000e+00 : f32
    %45 = vector.broadcast %cst_18 : f32 to vector<8x1xf32>
    %46 = vector.broadcast %cst_19 : f32 to vector<8x1xf32>
    %47 = arith.select %44, %45, %46 : vector<8x1xi1>, vector<8x1xf32>
    %48 = arith.addf %42, %47 : vector<8x1xf32>
    %cst_20 = arith.constant -0.707106769 : f32
    %49 = vector.broadcast %cst_20 : f32 to vector<8x1xf32>
    %50 = arith.cmpf ole, %26, %49 : vector<8x1xf32>
    %cst_21 = arith.constant 1.000000e+00 : f32
    %cst_22 = arith.constant 0.000000e+00 : f32
    %51 = vector.broadcast %cst_21 : f32 to vector<8x1xf32>
    %52 = vector.broadcast %cst_22 : f32 to vector<8x1xf32>
    %53 = arith.select %50, %51, %52 : vector<8x1xi1>, vector<8x1xf32>
    %54 = arith.addf %48, %53 : vector<8x1xf32>
    %cst_23 = arith.constant -1.000000e+00 : f32
    %55 = vector.broadcast %cst_23 : f32 to vector<8x1xf32>
    %56 = arith.cmpf ole, %26, %55 : vector<8x1xf32>
    %cst_24 = arith.constant 1.000000e+00 : f32
    %cst_25 = arith.constant 0.000000e+00 : f32
    %57 = vector.broadcast %cst_24 : f32 to vector<8x1xf32>
    %58 = vector.broadcast %cst_25 : f32 to vector<8x1xf32>
    %59 = arith.select %56, %57, %58 : vector<8x1xi1>, vector<8x1xf32>
    %60 = arith.addf %54, %59 : vector<8x1xf32>
    %cst_26 = arith.constant 5.000000e-01 : f32
    %61 = vector.broadcast %cst_26 : f32 to vector<8x1xf32>
    %62 = arith.mulf %60, %61 : vector<8x1xf32>
    %63 = math.floor %62 : vector<8x1xf32>
    %cst_27 = arith.constant 2.000000e+00 : f32
    %64 = vector.broadcast %cst_27 : f32 to vector<8x1xf32>
    %65 = arith.mulf %64, %63 : vector<8x1xf32>
    %66 = arith.subf %60, %65 : vector<8x1xf32>
    %cst_28 = arith.constant 2.000000e+00 : f32
    %67 = vector.broadcast %cst_28 : f32 to vector<8x1xf32>
    %68 = arith.mulf %67, %66 : vector<8x1xf32>
    %cst_29 = arith.constant 1.000000e+00 : f32
    %69 = vector.broadcast %cst_29 : f32 to vector<8x1xf32>
    %70 = arith.subf %69, %68 : vector<8x1xf32>
    %71 = arith.mulf %70, %35 : vector<8x1xf32>
    %cst_30 = arith.constant 2.000000e+00 : f32
    %72 = vector.broadcast %cst_30 : f32 to vector<8x1xf32>
    %73 = arith.mulf %72, %60 : vector<8x1xf32>
    %74 = arith.subf %71, %73 : vector<8x1xf32>
    %c0_31 = arith.constant 0 : index
    %c0_32 = arith.constant 0 : index
    %75 = memref.load %arg1[%c0_31, %c0_32] : memref<1x1xf32, #tpu.memory_space<smem>>
    %76 = arith.subf %74, %26 : vector<8x1xf32>
    %77 = vector.broadcast %75 : f32 to vector<8x1xf32>
    %78 = arith.mulf %76, %77 : vector<8x1xf32>
    %79 = vector.broadcast %78 : vector<8x1xf32> to vector<8x128xf32>
    %80 = arith.mulf %23, %79 : vector<8x128xf32>
    %81 = arith.addf %14, %80 : vector<8x128xf32>
    %c0_33 = arith.constant 0 : index
    %c0_34 = arith.constant 0 : index
    %82 = vector.load %arg3[%c0_33, %c0_34] : memref<8x1xf32, #tpu.memory_space<vmem>>, vector<8x1xf32>
    %83 = vector.broadcast %82 : vector<8x1xf32> to vector<8x128xf32>
    %84 = arith.mulf %81, %83 : vector<8x128xf32>
    %c0_35 = arith.constant 0 : index
    %c0_36 = arith.constant 0 : index
    %85 = vector.load %arg6[%c0_35, %c0_36] : memref<8x128xf32, #tpu.memory_space<vmem>>, vector<8x128xf32>
    tpu.vector_store %arg6[%c0_35, %c0_36], %84 {strides = array<i32>} : memref<8x128xf32, #tpu.memory_space<vmem>>, vector<8x128xf32>,
    return
  }
  func.func @transform_0(%arg0: i32) -> (i32, i32) {
    %c0_i32 = arith.constant 0 : i32
    %c0_i32_0 = arith.constant 0 : i32
    %c0_i32_1 = arith.constant 0 : i32
    return %c0_i32, %c0_i32_0 : i32, i32
  }
  func.func @transform_1(%arg0: i32) -> (i32, i32) {
    %c0_i32 = arith.constant 0 : i32
    %c0_i32_0 = arith.constant 0 : i32
    %c0_i32_1 = arith.constant 0 : i32
    return %c0_i32, %c0_i32_0 : i32, i32
  }
  func.func @transform_2(%arg0: i32) -> (i32, i32) {
    %c0_i32 = arith.constant 0 : i32
    %c0_i32_0 = arith.constant 0 : i32
    %c0_i32_1 = arith.constant 0 : i32
    return %c0_i32, %c0_i32_0 : i32, i32
  }
  func.func @transform_3(%arg0: i32) -> (i32, i32) {
    %c0_i32 = arith.constant 0 : i32
    %c0_i32_0 = arith.constant 0 : i32
    %c0_i32_1 = arith.constant 0 : i32
    return %c0_i32, %c0_i32_0 : i32, i32
  }
  func.func @transform_4(%arg0: i32) -> (i32, i32) {
    %c0_i32 = arith.constant 0 : i32
    %c0_i32_0 = arith.constant 0 : i32
    return %c0_i32, %arg0 : i32, i32
  }
  func.func @transform_5(%arg0: i32) -> (i32, i32) {
    %c0_i32 = arith.constant 0 : i32
    %c0_i32_0 = arith.constant 0 : i32
    return %c0_i32, %arg0 : i32, i32
  }
}

</mosaic_0001>

<llo_original>
// kernel: tpu_custom_call.1
$region0: #{tpu_custom_call.1}
  #allocation0 [shape = 'u32[]', space=smem, size = 0x4, offset = 0x4, fixed_abs, tag = 'smem constant byte address 0x4 - core index']
  #allocation1 [shape = 'u32[144,128]{1,0:T(1,128)}', space=vmem, size = 0x12000, scoped, tag = 'internal scratch']
  #allocation2 [shape = 'f32[1,1]{1,0:T(1,128)S(6)}', space=smem, size = 0x200, scoped, tag = 'scoped memory for tpu_custom_call.1']
  %s0 = inlined_call_operand.<no memory space> [shape: f32[1,1], index: 0, kind: input, shape index: {}]
  %s1 = inlined_call_operand.vmem [shape: s32[8,1], index: 1, kind: input, shape index: {}]
  %s2 = inlined_call_operand.vmem [shape: f32[8,1], index: 2, kind: input, shape index: {}]
  %s3 = inlined_call_operand.vmem [shape: f32[8,64], index: 3, kind: input, shape index: {}]
  %s4 = inlined_call_operand.hbm [shape: f32[64,256], index: 4, kind: input, shape index: {}]
  %s5 = inlined_call_operand.hbm [shape: f32[8,256], index: 5, kind: output, shape index: {}]
  %s6 = sld [smem:[#allocation0]]
  $region57: #{tpu_custom_call.1} parent=0
    _
  %s8 = ssub.s32 1, %s6
  %s9 = scalar_select 0, %s8, %s6
  %10 = sst [smem:[#allocation2]] %s0
  $region1: #{tpu_custom_call.1} parent=0
    #allocation3 [shape = 'u8[65536]{0}', space=vmem, size = 0x10000, scoped, tag = 'input window, operand 4']
    #allocation4 [shape = 's32[2]{0}', space=sflag, size = 0x8, scoped, tag = 'scoped memory for tpu_custom_call.1']
    #allocation5 [shape = 's32[2]{0}', space=sflag, size = 0x8, scoped, tag = 'scoped memory for tpu_custom_call.1']
    #allocation6 [shape = 'u8[8192]{0}', space=vmem, size = 0x2000, scoped, tag = 'output window, operand 0']
    %11 = vsyncpa [#allocation4], 0
    %s12 = scalar_lea.sflag [#allocation4], 1
    %13 = vsyncpa %s12, 0
    %14 = vsyncpa [#allocation5], 0
    %s15 = scalar_lea.sflag [#allocation5], 1
    %16 = vsyncpa %s15, 0
    loop: start=0, step=1, limit=4
    $region2: #{tpu_custom_call.1} parent=1 // loop_pre_header
      _
    $region3: #{tpu_custom_call.1} parent=1 // loop_header
      %s18 = sphi 0, %s22
      %p19 = scmp.ge.s32.totalorder %s18, 4
      %s26 = sphi 0, %s26
      %s28 = sphi 0, %s26
      %s29 = sphi 0, %s28
      %s43 = sphi 0, %s29
      %s47 = sphi 0, %s47
      %s49 = sphi 0, %s47
      %s50 = sphi 0, %s49
      %s64 = sphi 0, %s50
      %s68 = sphi 0, %s68
      %s70 = sphi 0, %s68
      %s71 = sphi 0, %s70
      %s85 = sphi 0, %s71
      %s89 = sphi 0, %s89
      %s91 = sphi 0, %s89
      %s92 = sphi 0, %s91
      %s106 = sphi 0, %s92
      %s112 = sphi 0, %s114
      %s115 = sphi 0, %s112
      %s116 = sphi 0, %s115
      %s132 = sphi 0, %s116
      %s138 = sphi 0, %s140
      %s141 = sphi 0, %s138
      %s142 = sphi 0, %s141
      %s158 = sphi 0, %s142
    $region4: #{tpu_custom_call.1} parent=1 // loop_header_branch
      %21 = sbr.rel (%p19) target = $region8
    $region5: #{tpu_custom_call.1} parent=1 // loop_body
      %s23 = ssub.s32 %s18, 1
      %s24 = ssub.s32 %s18, 2
      %s25 = sadd.s32 %s18, 1
      %s27 = sadd.s32 %s26, 1
      %p30 = scmp.eq.s32.totalorder %s18, 1
      %p31 = scmp.ne.s32.totalorder %s26, %s28
      %p32 = scmp.eq.s32.totalorder %s18, 0
      %p33 = por %p31, %p32
      %p34 = scmp.ne.s32.totalorder %s26, %s28
      %p35 = scmp.eq.s32.totalorder %s23, 1
      %p36 = por %p34, %p35
      %p37 = scmp.ne.s32.totalorder %s28, %s29
      %p38 = scmp.eq.s32.totalorder %s23, 0
      %p39 = por %p37, %p38
      %p40 = scmp.ne.s32.totalorder %s28, %s29
      %p41 = scmp.eq.s32.totalorder %s24, 1
      %p42 = por %p40, %p41
      %p44 = scmp.ne.s32.totalorder %s29, %s43
      %p45 = scmp.eq.s32.totalorder %s24, 0
      %p46 = por %p44, %p45
      %s48 = sadd.s32 %s47, 1
      %p51 = scmp.eq.s32.totalorder %s18, 1
      %p52 = scmp.ne.s32.totalorder %s47, %s49
      %p53 = scmp.eq.s32.totalorder %s18, 0
      %p54 = por %p52, %p53
      %p55 = scmp.ne.s32.totalorder %s47, %s49
      %p56 = scmp.eq.s32.totalorder %s23, 1
      %p57 = por %p55, %p56
      %p58 = scmp.ne.s32.totalorder %s49, %s50
      %p59 = scmp.eq.s32.totalorder %s23, 0
      %p60 = por %p58, %p59
      %p61 = scmp.ne.s32.totalorder %s49, %s50
      %p62 = scmp.eq.s32.totalorder %s24, 1
      %p63 = por %p61, %p62
      %p65 = scmp.ne.s32.totalorder %s50, %s64
      %p66 = scmp.eq.s32.totalorder %s24, 0
      %p67 = por %p65, %p66
      %s69 = sadd.s32 %s68, 1
      %p72 = scmp.eq.s32.totalorder %s18, 1
      %p73 = scmp.ne.s32.totalorder %s68, %s70
      %p74 = scmp.eq.s32.totalorder %s18, 0
      %p75 = por %p73, %p74
      %p76 = scmp.ne.s32.totalorder %s68, %s70
      %p77 = scmp.eq.s32.totalorder %s23, 1
      %p78 = por %p76, %p77
      %p79 = scmp.ne.s32.totalorder %s70, %s71
      %p80 = scmp.eq.s32.totalorder %s23, 0
      %p81 = por %p79, %p80
      %p82 = scmp.ne.s32.totalorder %s70, %s71
      %p83 = scmp.eq.s32.totalorder %s24, 1
      %p84 = por %p82, %p83
      %p86 = scmp.ne.s32.totalorder %s71, %s85
      %p87 = scmp.eq.s32.totalorder %s24, 0
      %p88 = por %p86, %p87
      %s90 = sadd.s32 %s89, 1
      %p93 = scmp.eq.s32.totalorder %s18, 1
      %p94 = scmp.ne.s32.totalorder %s89, %s91
      %p95 = scmp.eq.s32.totalorder %s18, 0
      %p96 = por %p94, %p95
      %p97 = scmp.ne.s32.totalorder %s89, %s91
      %p98 = scmp.eq.s32.totalorder %s23, 1
      %p99 = por %p97, %p98
      %p100 = scmp.ne.s32.totalorder %s91, %s92
      %p101 = scmp.eq.s32.totalorder %s23, 0
      %p102 = por %p100, %p101
      %p103 = scmp.ne.s32.totalorder %s91, %s92
      %p104 = scmp.eq.s32.totalorder %s24, 1
      %p105 = por %p103, %p104
      %p107 = scmp.ne.s32.totalorder %s92, %s106
      %p108 = scmp.eq.s32.totalorder %s24, 0
      %p109 = por %p107, %p108
      %s110 = ssub.s32 %s18, %s25
      %p111 = scmp.eq.s32.totalorder %s110, 0
      %s113 = sadd.s32 %s112, 1
      %s114 = scalar_select %p111, %s112, %s113
      %p117 = pneg %p111
      %p118 = scmp.eq.s32.totalorder %s18, 1
      %p119 = por %p117, %p118
      %p120 = scmp.ne.s32.totalorder %s112, %s115
      %p121 = scmp.eq.s32.totalorder %s18, 0
      %p122 = por %p120, %p121
      %p123 = scmp.ne.s32.totalorder %s112, %s115
      %p124 = scmp.eq.s32.totalorder %s23, 1
      %p125 = por %p123, %p124
      %p126 = scmp.ne.s32.totalorder %s115, %s116
      %p127 = scmp.eq.s32.totalorder %s23, 0
      %p128 = por %p126, %p127
      %p129 = scmp.ne.s32.totalorder %s115, %s116
      %p130 = scmp.eq.s32.totalorder %s24, 1
      %p131 = por %p129, %p130
      %p133 = scmp.ne.s32.totalorder %s116, %s132
      %p134 = scmp.eq.s32.totalorder %s24, 0
      %p135 = por %p133, %p134
      %s136 = ssub.s32 %s18, %s25
      %p137 = scmp.eq.s32.totalorder %s136, 0
      %s139 = sadd.s32 %s138, 1
      %s140 = scalar_select %p137, %s138, %s139
      %p143 = pneg %p137
      %p144 = scmp.eq.s32.totalorder %s18, 1
      %p145 = por %p143, %p144
      %p146 = scmp.ne.s32.totalorder %s138, %s141
      %p147 = scmp.eq.s32.totalorder %s18, 0
      %p148 = por %p146, %p147
      %p149 = scmp.ne.s32.totalorder %s138, %s141
      %p150 = scmp.eq.s32.totalorder %s23, 1
      %p151 = por %p149, %p150
      %p152 = scmp.ne.s32.totalorder %s141, %s142
      %p153 = scmp.eq.s32.totalorder %s23, 0
      %p154 = por %p152, %p153
      %p155 = scmp.ne.s32.totalorder %s141, %s142
      %p156 = scmp.eq.s32.totalorder %s24, 1
      %p157 = por %p155, %p156
      %p159 = scmp.ne.s32.totalorder %s142, %s158
      %p160 = scmp.eq.s32.totalorder %s24, 0
      %p161 = por %p159, %p160
      %p162 = scmp.le.s32.totalorder 1, %s18
      %p163 = scmp.lt.s32.totalorder %s18, 3
      %p164 = pnand %p162, %p163
      %p165 = pneg %p164
      // Predicated region
      $region9: #{tpu_custom_call.1} parent=5 // pred_check
        _
      $region10: #{tpu_custom_call.1} parent=5 // pred_check_branch
        %167 = sbr.rel (%p164) target = $region12
      $region11: #{tpu_custom_call.1} parent=5 // pred_region
        %s168 = ssub.s32 %s18, 1
        // Predicated region
        $region13: #{tpu_custom_call.1} parent=11 // pred_check
          %p169 = pneg %p39
        $region14: #{tpu_custom_call.1} parent=11 // pred_check_branch
          %171 = sbr.rel (%p169) target = $region16
        $region15: #{tpu_custom_call.1} parent=11 // pred_region
          _
        $region16: #{tpu_custom_call.1} parent=11 // pred_fallthru
          _
        // Predicated region
        $region17: #{tpu_custom_call.1} parent=11 // pred_check
          %p172 = pneg %p60
        $region18: #{tpu_custom_call.1} parent=11 // pred_check_branch
          %174 = sbr.rel (%p172) target = $region20
        $region19: #{tpu_custom_call.1} parent=11 // pred_region
          _
        $region20: #{tpu_custom_call.1} parent=11 // pred_fallthru
          _
        // Predicated region
        $region21: #{tpu_custom_call.1} parent=11 // pred_check
          %p175 = pneg %p81
        $region22: #{tpu_custom_call.1} parent=11 // pred_check_branch
          %177 = sbr.rel (%p175) target = $region24
        $region23: #{tpu_custom_call.1} parent=11 // pred_region
          _
        $region24: #{tpu_custom_call.1} parent=11 // pred_fallthru
          _
        // Predicated region
        $region25: #{tpu_custom_call.1} parent=11 // pred_check
          %p178 = pneg %p102
        $region26: #{tpu_custom_call.1} parent=11 // pred_check_branch
          %180 = sbr.rel (%p178) target = $region28
        $region27: #{tpu_custom_call.1} parent=11 // pred_region
          _
        $region28: #{tpu_custom_call.1} parent=11 // pred_fallthru
          _
      $region12: #{tpu_custom_call.1} parent=5 // pred_fallthru
        _
      %p181 = scmp.lt.s32.totalorder %s18, 2
      // Predicated region
      $region29: #{tpu_custom_call.1} parent=5 // pred_check
        %p182 = pneg %p181
      $region30: #{tpu_custom_call.1} parent=5 // pred_check_branch
        %184 = sbr.rel (%p182) target = $region32
      $region31: #{tpu_custom_call.1} parent=5 // pred_region
        // Predicated region
        $region33: #{tpu_custom_call.1} parent=31 // pred_check
          %p185 = pneg %p122
        $region34: #{tpu_custom_call.1} parent=31 // pred_check_branch
          %187 = sbr.rel (%p185) target = $region36
        $region35: #{tpu_custom_call.1} parent=31 // pred_region
          %s188 = sand.u32 %s112, 1
          %s189 = scalar_lea.sflag [#allocation4], %s188
          %s190 = sand.u32 %s112, 1
          %s191 = smul.addr %s190, 64
          %s192 = scalar_lea.vmem [#allocation3], %s191
          %s194 = ssub.s32 1024, 1024
          %195 = vsyncadd %s189, %s194
          %s196 = smul.addr %s18, 128
          %s197 = scalar_lea.hbm %s4, %s196
          %s198 = sshll.u32 %s192, 4
          %s199 = int_to_ptr.vmem [resolvable:$true] %s198
          %204 = dma.hbm_to_vmem [thread:$0]  %s197, 1024, %s199, %s189, 256, 128, 8
        $region36: #{tpu_custom_call.1} parent=31 // pred_fallthru
          _
      $region32: #{tpu_custom_call.1} parent=5 // pred_fallthru
        _
      %p205 = scmp.le.s32.totalorder 1, %s18
      %p206 = scmp.lt.s32.totalorder %s18, 3
      %p207 = pnand %p205, %p206
      %p208 = pneg %p207
      // Predicated region
      $region37: #{tpu_custom_call.1} parent=5 // pred_check
        _
      $region38: #{tpu_custom_call.1} parent=5 // pred_check_branch
        %210 = sbr.rel (%p207) target = $region40
      $region39: #{tpu_custom_call.1} parent=5 // pred_region
        %s211 = ssub.s32 %s18, 1
        %s212 = sand.u32 %s115, 1
        %s213 = scalar_lea.sflag [#allocation4], %s212
        %s214 = sand.u32 %s115, 1
        %s215 = smul.addr %s214, 64
        %s216 = scalar_lea.vmem [#allocation3], %s215
        // Predicated region
        $region41: #{tpu_custom_call.1} parent=39 // pred_check
          %p217 = pneg %p128
        $region42: #{tpu_custom_call.1} parent=39 // pred_check_branch
          %219 = sbr.rel (%p217) target = $region44
        $region43: #{tpu_custom_call.1} parent=39 // pred_region
          %220 = dma.done %s213, 1024
        $region44: #{tpu_custom_call.1} parent=39 // pred_fallthru
          _
        %p221 = pneg %p39
        %p222 = pneg %p36
        %p223 = pneg %p60
        %p224 = pneg %p57
        %p225 = pneg %p81
        %p226 = pneg %p78
        %p227 = pneg %p102
        %p228 = pneg %p99
        %s229 = sand.u32 %s115, 1
        %s230 = scalar_lea.sflag [#allocation4], %s229
        %s231 = sand.u32 %s115, 1
        %s232 = smul.addr %s231, 64
        %s233 = scalar_lea.vmem [#allocation3], %s232
        %p234 = pneg %p128
        %p235 = pneg %p125
        %p236 = pneg %p154
        %p237 = pneg %p151
        %s238 = sand.u32 %s141, 1
        %s239 = scalar_lea.sflag [#allocation5], %s238
        %s240 = sand.u32 %s141, 1
        %s241 = smul.addr %s240, 8
        %s242 = scalar_lea.vmem [#allocation6], %s241
        %v243 = vld [vmem:[%s3] sm:$0xff]
        %v244 = vld [vmem:[%s216] sm:$0xff]
        %v245 = vld [vmem:[%s216 + $0x8] sm:$0xff]
        %v246 = vld [vmem:[%s216 + $0x10] sm:$0xff]
        %v247 = vld [vmem:[%s216 + $0x18] sm:$0xff]
        %v248 = vld [vmem:[%s216 + $0x20] sm:$0xff]
        %v249 = vld [vmem:[%s216 + $0x28] sm:$0xff]
        %v250 = vld [vmem:[%s216 + $0x30] sm:$0xff]
        %v251 = vld [vmem:[%s216 + $0x38] sm:$0xff]
        %v252 = vmul.f32 %v244, %v244
        %v253 = vmul.f32 %v245, %v245
        %v254 = vmul.f32 %v246, %v246
        %v255 = vmul.f32 %v247, %v247
        %v256 = vmul.f32 %v248, %v248
        %v257 = vmul.f32 %v249, %v249
        %v258 = vmul.f32 %v250, %v250
        %v259 = vmul.f32 %v251, %v251
        %v260 = vadd.f32 %v252, %v253
        %v261 = vadd.f32 %v260, %v254
        %v262 = vadd.f32 %v261, %v255
        %v263 = vadd.f32 %v262, %v256
        %v264 = vadd.f32 %v263, %v257
        %v265 = vadd.f32 %v264, %v258
        %v266 = vadd.f32 %v265, %v259
        %v267 = vrot.slane %v266, 4
        %v268 = vadd.f32 %v266, %v267
        %v269 = vrot.slane %v268, 2
        %v270 = vadd.f32 %v268, %v269
        %v271 = vrot.slane %v270, 1
        %v272 = vadd.f32 %v270, %v271
        %v273 = vmax.f32 %v272, 1e-24
        %v274 = vrsqrt.pop %v273
        %v275 = vmul.f32 %v244, %v274
        %v276 = vmul.f32 %v245, %v274
        %v277 = vmul.f32 %v246, %v274
        %v278 = vmul.f32 %v247, %v274
        %v279 = vmul.f32 %v248, %v274
        %v280 = vmul.f32 %v249, %v274
        %v281 = vmul.f32 %v250, %v274
        %v282 = vmul.f32 %v251, %v274
        %vm283 = vcmask 523264
        %v285 = vsel %vm283, %v243, 0
        %287 = vmatprep.subr.mxu0 0.0
        %288 = vmatpush1.msra.mxu0 %v275
        %289 = vmatprep.subr.mxu0 0.0
        %290 = vmatpush1.msra.mxu0 %v276
        %291 = vmatprep.subr.mxu0 0.0
        %292 = vmatpush1.msra.mxu0 %v277
        %293 = vmatprep.subr.mxu0 0.0
        %294 = vmatpush1.msra.mxu0 %v278
        %295 = vmatprep.subr.mxu0 0.0
        %296 = vmatpush1.msra.mxu0 %v279
        %297 = vmatprep.subr.mxu0 0.0
        %298 = vmatpush1.msra.mxu0 %v280
        %299 = vmatprep.subr.mxu0 0.0
        %300 = vmatpush1.msra.mxu0 %v281
        %301 = vmatprep.subr.mxu0 0.0
        %302 = vmatpush1.msra.mxu0 %v282
        %303 = vmatprep.subr.mxu0 0.0
        %304 = vmatpush1.msra.mxu0 0.0
        %305 = vmatprep.subr.mxu0 0.0
        %306 = vmatpush1.msra.mxu0 0.0
        %307 = vmatprep.subr.mxu0 0.0
        %308 = vmatpush1.msra.mxu0 0.0
        %309 = vmatprep.subr.mxu0 0.0
        %310 = vmatpush1.msra.mxu0 0.0
        %311 = vmatprep.subr.mxu0 0.0
        %312 = vmatpush1.msra.mxu0 0.0
        %313 = vmatprep.subr.mxu0 0.0
        %314 = vmatpush1.msra.mxu0 0.0
        %315 = vmatprep.subr.mxu0 0.0
        %316 = vmatpush1.msra.mxu0 0.0
        %317 = vmatprep.subr.mxu0 0.0
        %318 = vmatpush1.msra.mxu0 0.0
        %319 = vmatprep.subr.mxu0 0.0
        %320 = vmatpush1.msra.mxu0 0.0
        %321 = vmatprep.subr.mxu0 0.0
        %322 = vmatpush1.msra.mxu0 0.0
        %323 = vmatprep.subr.mxu0 0.0
        %324 = vmatpush1.msra.mxu0 0.0
        %325 = vmatprep.subr.mxu0 0.0
        %326 = vmatpush1.msra.mxu0 0.0
        %327 = vmatprep.subr.mxu0 0.0
        %328 = vmatpush1.msra.mxu0 0.0
        %329 = vmatprep.subr.mxu0 0.0
        %330 = vmatpush1.msra.mxu0 0.0
        %331 = vmatprep.subr.mxu0 0.0
        %332 = vmatpush1.msra.mxu0 0.0
        %333 = vmatprep.subr.mxu0 0.0
        %334 = vmatpush1.msra.mxu0 0.0
        %335 = vmatprep.subr.mxu0 0.0
        %336 = vmatpush1.msra.mxu0 0.0
        %337 = vmatprep.subr.mxu0 0.0
        %338 = vmatpush1.msra.mxu0 0.0
        %339 = vmatprep.subr.mxu0 0.0
        %340 = vmatpush1.msra.mxu0 0.0
        %341 = vmatprep.subr.mxu0 0.0
        %342 = vmatpush1.msra.mxu0 0.0
        %343 = vmatprep.subr.mxu0 0.0
        %344 = vmatpush1.msra.mxu0 0.0
        %345 = vmatprep.subr.mxu0 0.0
        %346 = vmatpush1.msra.mxu0 0.0
        %347 = vmatprep.subr.mxu0 0.0
        %348 = vmatpush1.msra.mxu0 0.0
        %349 = vmatprep.subr.mxu0 0.0
        %350 = vmatpush1.msra.mxu0 0.0
        %351 = vmatprep.mubr.f32.mxu0 0.0
        %352 = vmatmul.mubr.f32.gmra.mrb[0].mxu0 %v285
        %v353 = vpop.f32.mrb[0].mxu0
        %v354 = vadd.f32 0.0, %v353
        %v355 = vpop.f32.mrb[0].mxu0
        %356 = vdwg.mxu0
        %v357 = vmax.f32 %v354, -1.0
        %v358 = vmin.f32 %v357, 1.0
        %s359 = smul.u32 %s23, 128
        %v360 = vlaneseq
        %v361 = vand.u32 %v360, 127
        %v362 = vstv %s359
        %v363 = vadd.s32 %v362, %v361
        %v364 = vld [vmem:[%s1] sm:$0xff]
        %365 = vset.pattern.permute.xlu0 0
        %366 = vperm.xlu0 %365, %v364
        %v367 = vpop.permute.xlu0 %366
        %vm368 = vcmp.eq.s32.totalorder %v363, %v367
        %v369 = vsel %vm368, 1, 0
        %v370 = vcvt.s32.f32 %v369
        %v371 = vmul.f32 %v370, %v358
        %372 = vadd.xlane.f32.xlu0 %v371
        %v373 = vpop.xlane.xlu0 %372
        %v374 = vmul.f32 %v373, %v373
        %v375 = vmul.f32 %v374, 8.0
        %v376 = vmul.f32 %v375, %v374
        %v377 = vsub.f32 %v376, %v375
        %v378 = vadd.f32 %v377, 1.0
        %vm379 = vcmp.le.f32.partialorder %v373, 0.70710677
        %v380 = vsel %vm379, 1.0, 0.0
        %v381 = vadd.f32 %v380, 0.0
        %vm382 = vcmp.le.f32.partialorder %v373, 1.7948966e-09
        %v383 = vsel %vm382, 1.0, 0.0
        %v384 = vadd.f32 %v381, %v383
        %vm385 = vcmp.le.f32.partialorder %v373, -0.70710677
        %v386 = vsel %vm385, 1.0, 0.0
        %v387 = vadd.f32 %v384, %v386
        %vm388 = vcmp.le.f32.partialorder %v373, -1.0
        %v389 = vsel %vm388, 1.0, 0.0
        %v390 = vadd.f32 %v387, %v389
        %v391 = vmul.f32 %v390, 0.5
        %v392 = vfloor.f32 %v391
        %v393 = vmul.f32 %v392, 2.0
        %v394 = vsub.f32 %v390, %v393
        %v395 = vmul.f32 %v394, 2.0
        %v396 = vsub.f32 1.0, %v395
        %v397 = vmul.f32 %v396, %v378
        %v398 = vmul.f32 %v390, 2.0
        %v399 = vsub.f32 %v397, %v398
        %s400 = sld [smem:[#allocation2]]
        %v401 = vsub.f32 %v399, %v373
        %v402 = vstv %s400
        %v403 = vmul.f32 %v401, %v402
        %v404 = vmul.f32 %v370, %v403
        %v405 = vadd.f32 %v358, %v404
        %v406 = vld [vmem:[%s2] sm:$0xff]
        %408 = vset.pattern.permute.xlu0 0
        %409 = vperm.xlu0 %408, %v406
        %v410 = vpop.permute.xlu0 %409
        %v412 = vmul.f32 %v405, %v410
        %413 = vst [vmem:[%s242] sm:$0xff] %v412
        %s414 = sand.u32 %s141, 1
        %s415 = scalar_lea.sflag [#allocation5], %s414
        %s416 = sand.u32 %s141, 1
        %s417 = smul.addr %s416, 8
        %s418 = scalar_lea.vmem [#allocation6], %s417
        // Predicated region
        $region45: #{tpu_custom_call.1} parent=39 // pred_check
          %p419 = pneg %p151
        $region46: #{tpu_custom_call.1} parent=39 // pred_check_branch
          %421 = sbr.rel (%p419) target = $region48
        $region47: #{tpu_custom_call.1} parent=39 // pred_region
          %s423 = ssub.s32 128, 128
          %424 = vsyncadd %s415, %s423
          %s425 = smul.addr %s23, 128
          %s426 = scalar_lea.hbm %s5, %s425
          %s428 = sshll.u32 %s418, 4
          %s429 = int_to_ptr.vmem [resolvable:$true] %s428
          %431 = dma.vmem_to_hbm [thread:$0]  %s429, 128, %s426, %s415
        $region48: #{tpu_custom_call.1} parent=39 // pred_fallthru
          _
      $region40: #{tpu_custom_call.1} parent=5 // pred_fallthru
        _
      %p432 = scmp.le.s32.totalorder 2, %s18
      // Predicated region
      $region49: #{tpu_custom_call.1} parent=5 // pred_check
        %p433 = pneg %p432
      $region50: #{tpu_custom_call.1} parent=5 // pred_check_branch
        %435 = sbr.rel (%p433) target = $region52
      $region51: #{tpu_custom_call.1} parent=5 // pred_region
        %s436 = ssub.s32 %s18, 2
        // Predicated region
        $region53: #{tpu_custom_call.1} parent=51 // pred_check
          %p437 = pneg %p157
        $region54: #{tpu_custom_call.1} parent=51 // pred_check_branch
          %439 = sbr.rel (%p437) target = $region56
        $region55: #{tpu_custom_call.1} parent=51 // pred_region
          %s440 = sand.u32 %s142, 1
          %s441 = scalar_lea.sflag [#allocation5], %s440
          %s442 = sand.u32 %s142, 1
          %s443 = smul.addr %s442, 8
          %s444 = scalar_lea.vmem [#allocation6], %s443
          %445 = dma.done %s441, 128
        $region56: #{tpu_custom_call.1} parent=51 // pred_fallthru
          _
      $region52: #{tpu_custom_call.1} parent=5 // pred_fallthru
        _
    $region6: #{tpu_custom_call.1} parent=1 // loop_footer
      %s22 = sadd.s32 1, %s18
    $region7: #{tpu_custom_call.1} parent=1 // loop_footer_branch
      %17 = sbr.rel target = $region3
    $region8: #{tpu_custom_call.1} parent=1 // loop_exit
      _
    %446 = vsyncpa [#allocation4], 1
    %s447 = scalar_lea.sflag [#allocation4], 1
    %448 = vsyncpa %s447, 1
    %449 = vsyncpa [#allocation5], 1
    %s450 = scalar_lea.sflag [#allocation5], 1
    %451 = vsyncpa %s450, 1

</llo_original>
